<compile_context>
chip_gen: v7x
topology: tpu7x:2x2x1
jax: 0.10.0
libtpu: 0.0.40
codegen_flags: <defaults>
</compile_context>

<pallas_src>
import jax
import jax.numpy as jnp
from jax.experimental import pallas as pl
from jax.experimental.pallas import tpu as pltpu


def _sigmoid(x):
    # sigmoid(x) = 0.5 * (1 + tanh(x / 2)): EUP tanh + one fma, no divide.
    return 0.5 * jnp.tanh(0.5 * x) + 0.5


def _lstm_fc_kernel(x_ref, h0_ref, c0_ref, wih_ref, whh_ref, wfc_ref, b_ref,
                    out_ref):
    """One LSTM step + Linear, entirely in VMEM.

    x_ref  : (Bp, D)   f32   flattened input (padded batch)
    h0_ref : (Bp, D)   f32   previous hidden state
    c0_ref : (Bp, D)   f32   previous cell state
    wih_ref: (D, 4D)   bf16  W_ih^T
    whh_ref: (D, 4D)   bf16  W_hh^T
    wfc_ref: (D, D)    bf16  fc weight^T
    b_ref  : (2, 4D)   f32   row 0 = b_ih + b_hh, row 1[:D] = fc bias
    out_ref: (Bp, 3D)  f32   [fc_out | h_new | c_new]  (single lane-dense slab)
    """
    D = c0_ref.shape[-1]

    x_bf = x_ref[...].astype(jnp.bfloat16)
    h_bf = h0_ref[...].astype(jnp.bfloat16)
    bias = b_ref[...]                       # (2, 4D) f32

    # Two MXU dots (bf16 operands, f32 accumulation) into one f32 gates value.
    gates = (jnp.dot(x_bf, wih_ref[...], preferred_element_type=jnp.float32)
             + jnp.dot(h_bf, whh_ref[...], preferred_element_type=jnp.float32)
             + bias[0:1, :])

    # PyTorch gate ordering: i, f, g, o.  With D a multiple of 128 these are
    # free lane-tile-aligned views.
    i_g = _sigmoid(gates[:, 0 * D:1 * D])
    f_g = _sigmoid(gates[:, 1 * D:2 * D])
    g_g = jnp.tanh(gates[:, 2 * D:3 * D])
    o_g = _sigmoid(gates[:, 3 * D:4 * D])

    c_new = f_g * c0_ref[...] + i_g * g_g   # f32 elementwise (VPU/EUP)
    h_new = o_g * jnp.tanh(c_new)

    # Final Linear layer on the LSTM output (bf16 operands, f32 accumulate).
    out = jnp.dot(h_new.astype(jnp.bfloat16), wfc_ref[...],
                  preferred_element_type=jnp.float32) + bias[1:2, 0:D]

    # One output buffer / DMA; every store below is (Bp, 128k) lane-dense.
    out_ref[:, 0 * D:1 * D] = out
    out_ref[:, 1 * D:2 * D] = h_new
    out_ref[:, 2 * D:3 * D] = c_new


def prepare_params(params):
    """One-time (init-time) fusion of the torch-layout parameters."""
    D = params["w_fc"].shape[0]
    w_ih_t = jnp.transpose(params["w_ih"]).astype(jnp.bfloat16)   # (D, 4D)
    w_hh_t = jnp.transpose(params["w_hh"]).astype(jnp.bfloat16)   # (D, 4D)
    w_fc_t = jnp.transpose(params["w_fc"]).astype(jnp.bfloat16)   # (D, D)
    bias = jnp.zeros((2, 4 * D), jnp.float32)
    bias = bias.at[0, :].set((params["b_ih"] + params["b_hh"]).astype(jnp.float32))
    bias = bias.at[1, :D].set(params["b_fc"].astype(jnp.float32))
    return {"w_ih_t": w_ih_t, "w_hh_t": w_hh_t, "w_fc_t": w_fc_t, "bias": bias}


def _maybe_compiler_params(D, Bp):
    """Raise the scoped-VMEM limit only when the un-tiled weights get big
    (v5e default scoped VMEM is 16 MiB, v6e/v7x 32 MiB)."""
    weight_bytes = (2 * D * 4 * D + D * D) * 2                    # bf16 weights
    act_bytes = (3 * Bp * D + Bp * 4 * D + Bp * 3 * D) * 4        # f32 activations
    need = 2 * (weight_bytes + act_bytes) + (2 << 20)
    if need <= (16 << 20):
        return None
    return pltpu.CompilerParams(vmem_limit_bytes=min(need, 100 << 20))


def _lstm_layer_forward(x, prepared, previous_state=None):
    """Mirrors LSTMLayer.forward.

    x: any shape (B, ...) -> flattened to (B, D) where D == input_dim.
    previous_state: optional tuple (h0, c0), each (1, B, D) (already-padded
    (1, Bp, D) state is also accepted and used without re-padding).
    Returns (output, (hn, cn)) with output (B, D), hn/cn (1, B, D).
    """
    B = x.shape[0]
    x2 = x.reshape(B, -1) if x.ndim > 2 else x
    D = x2.shape[-1]

    # bf16 MXU LHS packs 16 rows per sublane tile -> pad batch to 16.
    # Padded rows compute on their own junk only (row-wise independent) and
    # are sliced off below.
    Bp = max(16, ((B + 15) // 16) * 16)
    xp = x2 if B == Bp else jnp.pad(x2, ((0, Bp - B), (0, 0)))

    if previous_state is None:
        h0 = jnp.zeros((Bp, D), jnp.float32)
        c0 = jnp.zeros((Bp, D), jnp.float32)
    else:
        h0 = previous_state[0][0].astype(jnp.float32)
        c0 = previous_state[1][0].astype(jnp.float32)
        if h0.shape[0] != Bp:
            h0 = jnp.pad(h0, ((0, Bp - h0.shape[0]), (0, 0)))
            c0 = jnp.pad(c0, ((0, Bp - c0.shape[0]), (0, 0)))

    vmem = pl.BlockSpec(memory_space=pltpu.MemorySpace.VMEM)

    slab = pl.pallas_call(
        _lstm_fc_kernel,
        out_shape=jax.ShapeDtypeStruct((Bp, 3 * D), jnp.float32),
        in_specs=[vmem] * 7,
        out_specs=vmem,
        compiler_params=_maybe_compiler_params(D, Bp),
    )(xp, h0, c0,
      prepared["w_ih_t"], prepared["w_hh_t"], prepared["w_fc_t"],
      prepared["bias"])

    out = slab[:B, 0 * D:1 * D]
    hn = slab[None, :B, 1 * D:2 * D]
    cn = slab[None, :B, 2 * D:3 * D]
    return out, (hn, cn)


lstm_layer_forward = jax.jit(_lstm_layer_forward)


def init_params(key, input_dim):
    """Deterministic param init matching nn.LSTM(D, D) + nn.Linear(D, D) (torch layout)."""
    D = input_dim
    k = 1.0 / jnp.sqrt(jnp.float32(D))
    keys = jax.random.split(key, 6)
    u = lambda kk, shp: jax.random.uniform(kk, shp, jnp.float32, -k, k)
    return {
        "w_ih": u(keys[0], (4 * D, D)),   # torch lstm.weight_ih_l0
        "w_hh": u(keys[1], (4 * D, D)),   # torch lstm.weight_hh_l0
        "b_ih": u(keys[2], (4 * D,)),     # torch lstm.bias_ih_l0
        "b_hh": u(keys[3], (4 * D,)),     # torch lstm.bias_hh_l0
        "w_fc": u(keys[4], (D, D)),       # torch fc.weight
        "b_fc": u(keys[5], (D,)),         # torch fc.bias
    }


def _reference_forward(x, params, previous_state=None):
    """Pure-JAX f32 reference (PyTorch semantics) for correctness checking."""
    B = x.shape[0]
    x2 = x.reshape(B, -1) if x.ndim > 2 else x
    D = x2.shape[-1]
    if previous_state is None:
        h0 = jnp.zeros((B, D), jnp.float32)
        c0 = jnp.zeros((B, D), jnp.float32)
    else:
        h0 = previous_state[0][0]
        c0 = previous_state[1][0]
    gates = (x2 @ params["w_ih"].T + params["b_ih"]
             + h0 @ params["w_hh"].T + params["b_hh"])
    i_g = jax.nn.sigmoid(gates[:, 0 * D:1 * D])
    f_g = jax.nn.sigmoid(gates[:, 1 * D:2 * D])
    g_g = jnp.tanh(gates[:, 2 * D:3 * D])
    o_g = jax.nn.sigmoid(gates[:, 3 * D:4 * D])
    c_new = f_g * c0 + i_g * g_g
    h_new = o_g * jnp.tanh(c_new)
    out = h_new @ params["w_fc"].T + params["b_fc"]
    return out, (h_new[None], c_new[None])


if __name__ == "__main__":
    key = jax.random.PRNGKey(0)
    k_x, k_p = jax.random.split(key)

    # x has >2 dims -> forward flattens to (B, 128); input_dim = 128 (lane-dense).
    B, D = 2, 128
    x = jax.random.normal(k_x, (B, 4, 32), dtype=jnp.float32)
    params = init_params(k_p, D)
    prepared = prepare_params(params)          # one-time weight fusion / transpose

    # Step 1: zero initial state.
    out, (hn, cn) = lstm_layer_forward(x, prepared)
    # Step 2: feed the state back (exercises the previous_state path).
    out2, (hn2, cn2) = lstm_layer_forward(x, prepared, (hn, cn))
    jax.block_until_ready((out, hn, cn, out2, hn2, cn2))

    ref_out, (ref_hn, ref_cn) = _reference_forward(x, params)
    ref_out2, (ref_hn2, ref_cn2) = _reference_forward(x, params, (ref_hn, ref_cn))

    tol = dict(atol=3e-2, rtol=3e-2)   # bf16 MXU operands vs f32 reference
    assert out.shape == (B, D) and hn.shape == (1, B, D) and cn.shape == (1, B, D)
    assert jnp.allclose(out, ref_out, **tol), "output mismatch (step 1)"
    assert jnp.allclose(hn, ref_hn, **tol), "hn mismatch (step 1)"
    assert jnp.allclose(cn, ref_cn, **tol), "cn mismatch (step 1)"
    assert jnp.allclose(out2, ref_out2, **tol), "output mismatch (step 2)"
    assert jnp.allclose(hn2, ref_hn2, **tol), "hn mismatch (step 2)"
    assert jnp.allclose(cn2, ref_cn2, **tol), "cn mismatch (step 2)"

    print("KERNEL_OK")
</pallas_src>

<mosaic_0001>
module attributes {stable_mosaic.version = 11 : i64} {
  func.func @_lstm_fc_kernel(%arg0: memref<16x128xf32, #tpu.memory_space<vmem>>, %arg1: memref<16x128xf32, #tpu.memory_space<vmem>>, %arg2: memref<16x128xf32, #tpu.memory_space<vmem>>, %arg3: memref<128x512xbf16, #tpu.memory_space<vmem>>, %arg4: memref<128x512xbf16, #tpu.memory_space<vmem>>, %arg5: memref<128x128xbf16, #tpu.memory_space<vmem>>, %arg6: memref<2x512xf32, #tpu.memory_space<vmem>>, %arg7: memref<16x384xf32, #tpu.memory_space<vmem>>) attributes {dimension_semantics = [], scalar_prefetch = 0 : i64, scratch_operands = 0 : i64, tpu.core_type = #tpu.core_type<tc>} {
    %c0 = arith.constant 0 : index
    %c0_0 = arith.constant 0 : index
    %0 = vector.load %arg0[%c0, %c0_0] : memref<16x128xf32, #tpu.memory_space<vmem>>, vector<16x128xf32>
    %1 = arith.truncf %0 : vector<16x128xf32> to vector<16x128xbf16>
    %c0_1 = arith.constant 0 : index
    %c0_2 = arith.constant 0 : index
    %2 = vector.load %arg1[%c0_1, %c0_2] : memref<16x128xf32, #tpu.memory_space<vmem>>, vector<16x128xf32>
    %3 = arith.truncf %2 : vector<16x128xf32> to vector<16x128xbf16>
    %c0_3 = arith.constant 0 : index
    %c0_4 = arith.constant 0 : index
    %4 = vector.load %arg6[%c0_3, %c0_4] : memref<2x512xf32, #tpu.memory_space<vmem>>, vector<2x512xf32>
    %c0_5 = arith.constant 0 : index
    %c0_6 = arith.constant 0 : index
    %5 = vector.load %arg3[%c0_5, %c0_6] : memref<128x512xbf16, #tpu.memory_space<vmem>>, vector<128x512xbf16>
    %cst = arith.constant dense<0.000000e+00> : vector<16x512xf32>
    %6 = tpu.matmul %1, %5, %cst {dimension_numbers = #tpu.dot_dimension_numbers<[1], [0], [0], [1], [0, 0, 1, 1], [], []>} : vector<16x128xbf16>, vector<128x512xbf16>, vector<16x512xf32> -> vector<16x512xf32>
    %c0_7 = arith.constant 0 : index
    %c0_8 = arith.constant 0 : index
    %7 = vector.load %arg4[%c0_7, %c0_8] : memref<128x512xbf16, #tpu.memory_space<vmem>>, vector<128x512xbf16>
    %cst_9 = arith.constant dense<0.000000e+00> : vector<16x512xf32>
    %8 = tpu.matmul %3, %7, %cst_9 {dimension_numbers = #tpu.dot_dimension_numbers<[1], [0], [0], [1], [0, 0, 1, 1], [], []>} : vector<16x128xbf16>, vector<128x512xbf16>, vector<16x512xf32> -> vector<16x512xf32>
    %9 = arith.addf %6, %8 : vector<16x512xf32>
    %10 = vector.extract_strided_slice %4 {offsets = [0, 0], sizes = [1, 512], strides = [1, 1]} : vector<2x512xf32> to vector<1x512xf32>
    %11 = vector.broadcast %10 : vector<1x512xf32> to vector<16x512xf32>
    %12 = arith.addf %9, %11 : vector<16x512xf32>
    %13 = vector.extract_strided_slice %12 {offsets = [0, 0], sizes = [16, 128], strides = [1, 1]} : vector<16x512xf32> to vector<16x128xf32>
    %cst_10 = arith.constant 5.000000e-01 : f32
    %14 = vector.broadcast %cst_10 : f32 to vector<16x128xf32>
    %15 = arith.mulf %14, %13 : vector<16x128xf32>
    %16 = math.tanh %15 : vector<16x128xf32>
    %cst_11 = arith.constant 5.000000e-01 : f32
    %17 = vector.broadcast %cst_11 : f32 to vector<16x128xf32>
    %18 = arith.mulf %17, %16 : vector<16x128xf32>
    %cst_12 = arith.constant 5.000000e-01 : f32
    %19 = vector.broadcast %cst_12 : f32 to vector<16x128xf32>
    %20 = arith.addf %18, %19 : vector<16x128xf32>
    %21 = vector.extract_strided_slice %12 {offsets = [0, 128], sizes = [16, 128], strides = [1, 1]} : vector<16x512xf32> to vector<16x128xf32>
    %cst_13 = arith.constant 5.000000e-01 : f32
    %22 = vector.broadcast %cst_13 : f32 to vector<16x128xf32>
    %23 = arith.mulf %22, %21 : vector<16x128xf32>
    %24 = math.tanh %23 : vector<16x128xf32>
    %cst_14 = arith.constant 5.000000e-01 : f32
    %25 = vector.broadcast %cst_14 : f32 to vector<16x128xf32>
    %26 = arith.mulf %25, %24 : vector<16x128xf32>
    %cst_15 = arith.constant 5.000000e-01 : f32
    %27 = vector.broadcast %cst_15 : f32 to vector<16x128xf32>
    %28 = arith.addf %26, %27 : vector<16x128xf32>
    %29 = vector.extract_strided_slice %12 {offsets = [0, 256], sizes = [16, 128], strides = [1, 1]} : vector<16x512xf32> to vector<16x128xf32>
    %30 = math.tanh %29 : vector<16x128xf32>
    %31 = vector.extract_strided_slice %12 {offsets = [0, 384], sizes = [16, 128], strides = [1, 1]} : vector<16x512xf32> to vector<16x128xf32>
    %cst_16 = arith.constant 5.000000e-01 : f32
    %32 = vector.broadcast %cst_16 : f32 to vector<16x128xf32>
    %33 = arith.mulf %32, %31 : vector<16x128xf32>
    %34 = math.tanh %33 : vector<16x128xf32>
    %cst_17 = arith.constant 5.000000e-01 : f32
    %35 = vector.broadcast %cst_17 : f32 to vector<16x128xf32>
    %36 = arith.mulf %35, %34 : vector<16x128xf32>
    %cst_18 = arith.constant 5.000000e-01 : f32
    %37 = vector.broadcast %cst_18 : f32 to vector<16x128xf32>
    %38 = arith.addf %36, %37 : vector<16x128xf32>
    %c0_19 = arith.constant 0 : index
    %c0_20 = arith.constant 0 : index
    %39 = vector.load %arg2[%c0_19, %c0_20] : memref<16x128xf32, #tpu.memory_space<vmem>>, vector<16x128xf32>
    %40 = arith.mulf %28, %39 : vector<16x128xf32>
    %41 = arith.mulf %20, %30 : vector<16x128xf32>
    %42 = arith.addf %40, %41 : vector<16x128xf32>
    %43 = math.tanh %42 : vector<16x128xf32>
    %44 = arith.mulf %38, %43 : vector<16x128xf32>
    %45 = arith.truncf %44 : vector<16x128xf32> to vector<16x128xbf16>
    %c0_21 = arith.constant 0 : index
    %c0_22 = arith.constant 0 : index
    %46 = vector.load %arg5[%c0_21, %c0_22] : memref<128x128xbf16, #tpu.memory_space<vmem>>, vector<128x128xbf16>
    %cst_23 = arith.constant dense<0.000000e+00> : vector<16x128xf32>
    %47 = tpu.matmul %45, %46, %cst_23 {dimension_numbers = #tpu.dot_dimension_numbers<[1], [0], [0], [1], [0, 0, 1, 1], [], []>} : vector<16x128xbf16>, vector<128x128xbf16>, vector<16x128xf32> -> vector<16x128xf32>
    %48 = vector.extract_strided_slice %4 {offsets = [1, 0], sizes = [1, 128], strides = [1, 1]} : vector<2x512xf32> to vector<1x128xf32>
    %49 = vector.broadcast %48 : vector<1x128xf32> to vector<16x128xf32>
    %50 = arith.addf %47, %49 : vector<16x128xf32>
    %c0_24 = arith.constant 0 : index
    %c0_25 = arith.constant 0 : index
    %51 = vector.load %arg7[%c0_24, %c0_25] : memref<16x384xf32, #tpu.memory_space<vmem>>, vector<16x128xf32>
    tpu.vector_store %arg7[%c0_24, %c0_25], %50 {strides = array<i32>} : memref<16x384xf32, #tpu.memory_space<vmem>>, vector<16x128xf32>,
    %c0_26 = arith.constant 0 : index
    %c128 = arith.constant 128 : index
    %52 = vector.load %arg7[%c0_26, %c128] : memref<16x384xf32, #tpu.memory_space<vmem>>, vector<16x128xf32>
    tpu.vector_store %arg7[%c0_26, %c128], %44 {strides = array<i32>} : memref<16x384xf32, #tpu.memory_space<vmem>>, vector<16x128xf32>,
    %c0_27 = arith.constant 0 : index
    %c256 = arith.constant 256 : index
    %53 = vector.load %arg7[%c0_27, %c256] : memref<16x384xf32, #tpu.memory_space<vmem>>, vector<16x128xf32>
    tpu.vector_store %arg7[%c0_27, %c256], %42 {strides = array<i32>} : memref<16x384xf32, #tpu.memory_space<vmem>>, vector<16x128xf32>,
    return
  }
}

</mosaic_0001>

<llo_original>
// kernel: _lstm_layer_forward.1
$region0: #{_lstm_layer_forward.1}
  #allocation0 [shape = 'u32[]', space=smem, size = 0x4, offset = 0x4, fixed_abs, tag = 'smem constant byte address 0x4 - core index']
  #allocation1 [shape = 'u32[144,128]{1,0:T(1,128)}', space=vmem, size = 0x12000, scoped, tag = 'internal scratch']
  %s0 = inlined_call_operand.vmem [shape: f32[16,128], index: 0, kind: input, shape index: {}]
  %s1 = inlined_call_operand.vmem [shape: f32[16,128], index: 1, kind: input, shape index: {}, may-alias: {1,2}]
  %s2 = inlined_call_operand.vmem [shape: f32[16,128], index: 2, kind: input, shape index: {}, may-alias: {1,2}]
  %s3 = inlined_call_operand.hbm [shape: bf16[128,512], index: 3, kind: input, shape index: {}]
  %s4 = inlined_call_operand.hbm [shape: bf16[128,512], index: 4, kind: input, shape index: {}]
  %s5 = inlined_call_operand.hbm [shape: bf16[128,128], index: 5, kind: input, shape index: {}]
  %s6 = inlined_call_operand.vmem [shape: f32[2,512], index: 6, kind: input, shape index: {}]
  %s7 = inlined_call_operand.vmem [shape: f32[16,384], index: 7, kind: output, shape index: {}]
  %s8 = sld [smem:[#allocation0]]
  $region50: #{_lstm_layer_forward.1} parent=0
    _
  %s10 = ssub.s32 1, %s8
  %s11 = scalar_select 0, %s10, %s8
  $region1: #{_lstm_layer_forward.1} parent=0
    #allocation2 [shape = 'u8[131072]{0}', space=vmem, size = 0x20000, scoped, tag = 'input window, operand 3, single buffered']
    #allocation3 [shape = 's32[1]{0}', space=sflag, size = 0x4, scoped, tag = 'scoped memory for _lstm_layer_forward.1']
    #allocation4 [shape = 'u8[131072]{0}', space=vmem, size = 0x20000, scoped, tag = 'input window, operand 4, single buffered']
    #allocation5 [shape = 's32[1]{0}', space=sflag, size = 0x4, scoped, tag = 'scoped memory for _lstm_layer_forward.1']
    #allocation6 [shape = 'u8[32768]{0}', space=vmem, size = 0x8000, scoped, tag = 'input window, operand 5, single buffered']
    %12 = vsyncpa [#allocation3], 0
    %13 = vsyncpa [#allocation5], 0
    // Predicated region
    $region2: #{_lstm_layer_forward.1} parent=1 // pred_check
      _
    $region3: #{_lstm_layer_forward.1} parent=1 // pred_check_branch
      %15 = sbr.rel (0) target = $region5
    $region4: #{_lstm_layer_forward.1} parent=1 // pred_region
      _
    $region5: #{_lstm_layer_forward.1} parent=1 // pred_fallthru
      _
    // Predicated region
    $region6: #{_lstm_layer_forward.1} parent=1 // pred_check
      _
    $region7: #{_lstm_layer_forward.1} parent=1 // pred_check_branch
      %17 = sbr.rel (0) target = $region9
    $region8: #{_lstm_layer_forward.1} parent=1 // pred_region
      _
    $region9: #{_lstm_layer_forward.1} parent=1 // pred_fallthru
      _
    // Predicated region
    $region10: #{_lstm_layer_forward.1} parent=1 // pred_check
      _
    $region11: #{_lstm_layer_forward.1} parent=1 // pred_check_branch
      %19 = sbr.rel (0) target = $region13
    $region12: #{_lstm_layer_forward.1} parent=1 // pred_region
      _
    $region13: #{_lstm_layer_forward.1} parent=1 // pred_fallthru
      _
    // Predicated region
    $region14: #{_lstm_layer_forward.1} parent=1 // pred_check
      _
    $region15: #{_lstm_layer_forward.1} parent=1 // pred_check_branch
      %21 = sbr.rel (0) target = $region17
    $region16: #{_lstm_layer_forward.1} parent=1 // pred_region
      %s23 = ssub.s32 4096, 4096
      %24 = vsyncadd [#allocation3], %s23
      %s25 = sshll.u32 [#allocation2], 4
      %s26 = int_to_ptr.vmem [resolvable:$true] %s25
      %31 = dma.hbm_to_vmem [thread:$0]  %s3, 4096, %s26, [#allocation3], 256, 256, 16
    $region17: #{_lstm_layer_forward.1} parent=1 // pred_fallthru
      _
    // Predicated region
    $region18: #{_lstm_layer_forward.1} parent=1 // pred_check
      _
    $region19: #{_lstm_layer_forward.1} parent=1 // pred_check_branch
      %33 = sbr.rel (0) target = $region21
    $region20: #{_lstm_layer_forward.1} parent=1 // pred_region
      %s35 = ssub.s32 4096, 4096
      %36 = vsyncadd [#allocation5], %s35
      %s37 = sshll.u32 [#allocation4], 4
      %s38 = int_to_ptr.vmem [resolvable:$true] %s37
      %43 = dma.hbm_to_vmem [thread:$0]  %s4, 4096, %s38, [#allocation5], 256, 256, 16
    $region21: #{_lstm_layer_forward.1} parent=1 // pred_fallthru
      _
    // Predicated region
    $region22: #{_lstm_layer_forward.1} parent=1 // pred_check
      _
    $region23: #{_lstm_layer_forward.1} parent=1 // pred_check_branch
      %45 = sbr.rel (0) target = $region25
    $region24: #{_lstm_layer_forward.1} parent=1 // pred_region
      %s47 = ssub.s32 1024, 1024
      %48 = vsyncadd [#allocation5], %s47
      %s49 = sshll.u32 [#allocation6], 4
      %s50 = int_to_ptr.vmem [resolvable:$true] %s49
      %55 = dma.hbm_to_vmem [thread:$0]  %s5, 1024, %s50, [#allocation5], 64, 64, 4
    $region25: #{_lstm_layer_forward.1} parent=1 // pred_fallthru
      _
    // Predicated region
    $region26: #{_lstm_layer_forward.1} parent=1 // pred_check
      _
    $region27: #{_lstm_layer_forward.1} parent=1 // pred_check_branch
      %57 = sbr.rel (0) target = $region29
    $region28: #{_lstm_layer_forward.1} parent=1 // pred_region
      _
    $region29: #{_lstm_layer_forward.1} parent=1 // pred_fallthru
      _
    // Predicated region
    $region30: #{_lstm_layer_forward.1} parent=1 // pred_check
      _
    $region31: #{_lstm_layer_forward.1} parent=1 // pred_check_branch
      %59 = sbr.rel (0) target = $region33
    $region32: #{_lstm_layer_forward.1} parent=1 // pred_region
      %60 = dma.done [#allocation3], 4096
    $region33: #{_lstm_layer_forward.1} parent=1 // pred_fallthru
      _
    // Predicated region
    $region34: #{_lstm_layer_forward.1} parent=1 // pred_check
      _
    $region35: #{_lstm_layer_forward.1} parent=1 // pred_check_branch
      %62 = sbr.rel (0) target = $region37
    $region36: #{_lstm_layer_forward.1} parent=1 // pred_region
      %63 = dma.done [#allocation5], 4096
    $region37: #{_lstm_layer_forward.1} parent=1 // pred_fallthru
      _
    // Predicated region
    $region38: #{_lstm_layer_forward.1} parent=1 // pred_check
      _
    $region39: #{_lstm_layer_forward.1} parent=1 // pred_check_branch
      %65 = sbr.rel (0) target = $region41
    $region40: #{_lstm_layer_forward.1} parent=1 // pred_region
      %66 = dma.done [#allocation5], 1024
    $region41: #{_lstm_layer_forward.1} parent=1 // pred_fallthru
      _
    %v68 = vld [vmem:[%s0] sm:$0xff]
    %v69 = vld [vmem:[%s0 + $0x8] sm:$0xff]
    %v70 = vpack.c.bf16 %v69, %v68
    %v71 = vld [vmem:[%s1] sm:$0xff]
    %v72 = vld [vmem:[%s1 + $0x8] sm:$0xff]
    %v73 = vpack.c.bf16 %v72, %v71
    %v74 = vld [vmem:[%s6] sm:$0xff]
    %v75 = vld [vmem:[#allocation2] sm:$0xff]
    %v76 = vld [vmem:[#allocation2 + $0x8] sm:$0xff]
    %v77 = vld [vmem:[#allocation2 + $0x10] sm:$0xff]
    %v78 = vld [vmem:[#allocation2 + $0x18] sm:$0xff]
    %v79 = vld [vmem:[#allocation2 + $0x20] sm:$0xff]
    %v80 = vld [vmem:[#allocation2 + $0x28] sm:$0xff]
    %v81 = vld [vmem:[#allocation2 + $0x30] sm:$0xff]
    %v82 = vld [vmem:[#allocation2 + $0x38] sm:$0xff]
    %v83 = vld [vmem:[#allocation2 + $0x40] sm:$0xff]
    %v84 = vld [vmem:[#allocation2 + $0x48] sm:$0xff]
    %v85 = vld [vmem:[#allocation2 + $0x50] sm:$0xff]
    %v86 = vld [vmem:[#allocation2 + $0x58] sm:$0xff]
    %v87 = vld [vmem:[#allocation2 + $0x60] sm:$0xff]
    %v88 = vld [vmem:[#allocation2 + $0x68] sm:$0xff]
    %v89 = vld [vmem:[#allocation2 + $0x70] sm:$0xff]
    %v90 = vld [vmem:[#allocation2 + $0x78] sm:$0xff]
    %v91 = vld [vmem:[#allocation2 + $0x80] sm:$0xff]
    %v92 = vld [vmem:[#allocation2 + $0x88] sm:$0xff]
    %v93 = vld [vmem:[#allocation2 + $0x90] sm:$0xff]
    %v94 = vld [vmem:[#allocation2 + $0x98] sm:$0xff]
    %v95 = vld [vmem:[#allocation2 + $0xa0] sm:$0xff]
    %v96 = vld [vmem:[#allocation2 + $0xa8] sm:$0xff]
    %v97 = vld [vmem:[#allocation2 + $0xb0] sm:$0xff]
    %v98 = vld [vmem:[#allocation2 + $0xb8] sm:$0xff]
    %v99 = vld [vmem:[#allocation2 + $0xc0] sm:$0xff]
    %v100 = vld [vmem:[#allocation2 + $0xc8] sm:$0xff]
    %v101 = vld [vmem:[#allocation2 + $0xd0] sm:$0xff]
    %v102 = vld [vmem:[#allocation2 + $0xd8] sm:$0xff]
    %v103 = vld [vmem:[#allocation2 + $0xe0] sm:$0xff]
    %v104 = vld [vmem:[#allocation2 + $0xe8] sm:$0xff]
    %v105 = vld [vmem:[#allocation2 + $0xf0] sm:$0xff]
    %v106 = vld [vmem:[#allocation2 + $0xf8] sm:$0xff]
    %v107 = vld [vmem:[#allocation4] sm:$0xff]
    %v108 = vld [vmem:[#allocation4 + $0x8] sm:$0xff]
    %v109 = vld [vmem:[#allocation4 + $0x10] sm:$0xff]
    %v110 = vld [vmem:[#allocation4 + $0x18] sm:$0xff]
    %v111 = vld [vmem:[#allocation4 + $0x20] sm:$0xff]
    %v112 = vld [vmem:[#allocation4 + $0x28] sm:$0xff]
    %v113 = vld [vmem:[#allocation4 + $0x30] sm:$0xff]
    %v114 = vld [vmem:[#allocation4 + $0x38] sm:$0xff]
    %v115 = vld [vmem:[#allocation4 + $0x40] sm:$0xff]
    %v116 = vld [vmem:[#allocation4 + $0x48] sm:$0xff]
    %v117 = vld [vmem:[#allocation4 + $0x50] sm:$0xff]
    %v118 = vld [vmem:[#allocation4 + $0x58] sm:$0xff]
    %v119 = vld [vmem:[#allocation4 + $0x60] sm:$0xff]
    %v120 = vld [vmem:[#allocation4 + $0x68] sm:$0xff]
    %v121 = vld [vmem:[#allocation4 + $0x70] sm:$0xff]
    %v122 = vld [vmem:[#allocation4 + $0x78] sm:$0xff]
    %v123 = vld [vmem:[#allocation4 + $0x80] sm:$0xff]
    %v124 = vld [vmem:[#allocation4 + $0x88] sm:$0xff]
    %v125 = vld [vmem:[#allocation4 + $0x90] sm:$0xff]
    %v126 = vld [vmem:[#allocation4 + $0x98] sm:$0xff]
    %v127 = vld [vmem:[#allocation4 + $0xa0] sm:$0xff]
    %v128 = vld [vmem:[#allocation4 + $0xa8] sm:$0xff]
    %v129 = vld [vmem:[#allocation4 + $0xb0] sm:$0xff]
    %v130 = vld [vmem:[#allocation4 + $0xb8] sm:$0xff]
    %v131 = vld [vmem:[#allocation4 + $0xc0] sm:$0xff]
    %v132 = vld [vmem:[#allocation4 + $0xc8] sm:$0xff]
    %v133 = vld [vmem:[#allocation4 + $0xd0] sm:$0xff]
    %v134 = vld [vmem:[#allocation4 + $0xd8] sm:$0xff]
    %v135 = vld [vmem:[#allocation4 + $0xe0] sm:$0xff]
    %v136 = vld [vmem:[#allocation4 + $0xe8] sm:$0xff]
    %v137 = vld [vmem:[#allocation4 + $0xf0] sm:$0xff]
    %v138 = vld [vmem:[#allocation4 + $0xf8] sm:$0xff]
    %v171 = vunpack.c.l.b16 %v107
    %v172 = vunpack.c.h.b16 %v107
    %v173 = vunpack.c.l.b16 %v108
    %v174 = vunpack.c.h.b16 %v108
    %v175 = vunpack.c.l.b16 %v109
    %v176 = vunpack.c.h.b16 %v109
    %v177 = vunpack.c.l.b16 %v110
    %v178 = vunpack.c.h.b16 %v110
    %v179 = vunpack.c.l.b16 %v111
    %v180 = vunpack.c.h.b16 %v111
    %v181 = vunpack.c.l.b16 %v112
    %v182 = vunpack.c.h.b16 %v112
    %v183 = vunpack.c.l.b16 %v113
    %v184 = vunpack.c.h.b16 %v113
    %v185 = vunpack.c.l.b16 %v114
    %v186 = vunpack.c.h.b16 %v114
    %v187 = vunpack.c.l.b16 %v115
    %v188 = vunpack.c.h.b16 %v115
    %v189 = vunpack.c.l.b16 %v116
    %v190 = vunpack.c.h.b16 %v116
    %v191 = vunpack.c.l.b16 %v117
    %v192 = vunpack.c.h.b16 %v117
    %v193 = vunpack.c.l.b16 %v118
    %v194 = vunpack.c.h.b16 %v118
    %v195 = vunpack.c.l.b16 %v119
    %v196 = vunpack.c.h.b16 %v119
    %v197 = vunpack.c.l.b16 %v120
    %v198 = vunpack.c.h.b16 %v120
    %v199 = vunpack.c.l.b16 %v121
    %v200 = vunpack.c.h.b16 %v121
    %v201 = vunpack.c.l.b16 %v122
    %v202 = vunpack.c.h.b16 %v122
    %v203 = vunpack.c.l.b16 %v123
    %v204 = vunpack.c.h.b16 %v123
    %v205 = vunpack.c.l.b16 %v124
    %v206 = vunpack.c.h.b16 %v124
    %v207 = vunpack.c.l.b16 %v125
    %v208 = vunpack.c.h.b16 %v125
    %v209 = vunpack.c.l.b16 %v126
    %v210 = vunpack.c.h.b16 %v126
    %v211 = vunpack.c.l.b16 %v127
    %v212 = vunpack.c.h.b16 %v127
    %v213 = vunpack.c.l.b16 %v128
    %v214 = vunpack.c.h.b16 %v128
    %v215 = vunpack.c.l.b16 %v129
    %v216 = vunpack.c.h.b16 %v129
    %v217 = vunpack.c.l.b16 %v130
    %v218 = vunpack.c.h.b16 %v130
    %v219 = vunpack.c.l.b16 %v131
    %v220 = vunpack.c.h.b16 %v131
    %v221 = vunpack.c.l.b16 %v132
    %v222 = vunpack.c.h.b16 %v132
    %v223 = vunpack.c.l.b16 %v133
    %v224 = vunpack.c.h.b16 %v133
    %v225 = vunpack.c.l.b16 %v134
    %v226 = vunpack.c.h.b16 %v134
    %v227 = vunpack.c.l.b16 %v135
    %v228 = vunpack.c.h.b16 %v135
    %v229 = vunpack.c.l.b16 %v136
    %v230 = vunpack.c.h.b16 %v136
    %v231 = vunpack.c.l.b16 %v137
    %v232 = vunpack.c.h.b16 %v137
    %v233 = vunpack.c.l.b16 %v138
    %v234 = vunpack.c.h.b16 %v138
    %v235 = vpack.c.b16 %v175, %v171
    %v236 = vpack.c.b16 %v176, %v172
    %v237 = vpack.c.b16 %v177, %v173
    %v238 = vpack.c.b16 %v178, %v174
    %v239 = vpack.c.b16 %v183, %v179
    %v240 = vpack.c.b16 %v184, %v180
    %v241 = vpack.c.b16 %v185, %v181
    %v242 = vpack.c.b16 %v186, %v182
    %v243 = vpack.c.b16 %v191, %v187
    %v244 = vpack.c.b16 %v192, %v188
    %v245 = vpack.c.b16 %v193, %v189
    %v246 = vpack.c.b16 %v194, %v190
    %v247 = vpack.c.b16 %v199, %v195
    %v248 = vpack.c.b16 %v200, %v196
    %v249 = vpack.c.b16 %v201, %v197
    %v250 = vpack.c.b16 %v202, %v198
    %v251 = vpack.c.b16 %v207, %v203
    %v252 = vpack.c.b16 %v208, %v204
    %v253 = vpack.c.b16 %v209, %v205
    %v254 = vpack.c.b16 %v210, %v206
    %v255 = vpack.c.b16 %v215, %v211
    %v256 = vpack.c.b16 %v216, %v212
    %v257 = vpack.c.b16 %v217, %v213
    %v258 = vpack.c.b16 %v218, %v214
    %v259 = vpack.c.b16 %v223, %v219
    %v260 = vpack.c.b16 %v224, %v220
    %v261 = vpack.c.b16 %v225, %v221
    %v262 = vpack.c.b16 %v226, %v222
    %v263 = vpack.c.b16 %v231, %v227
    %v264 = vpack.c.b16 %v232, %v228
    %v265 = vpack.c.b16 %v233, %v229
    %v266 = vpack.c.b16 %v234, %v230
    %299 = vmatprep.subr.bf16.mxu0 %v236
    %300 = vmatpush1.bf16.msra.mxu0 %v235
    %301 = vmatprep.subr.bf16.mxu0 %v240
    %302 = vmatpush1.bf16.msra.mxu0 %v239
    %303 = vmatprep.subr.bf16.mxu0 %v244
    %304 = vmatpush1.bf16.msra.mxu0 %v243
    %305 = vmatprep.subr.bf16.mxu0 %v248
    %306 = vmatpush1.bf16.msra.mxu0 %v247
    %307 = vmatprep.subr.bf16.mxu0 %v252
    %308 = vmatpush1.bf16.msra.mxu0 %v251
    %309 = vmatprep.subr.bf16.mxu0 %v256
    %310 = vmatpush1.bf16.msra.mxu0 %v255
    %311 = vmatprep.subr.bf16.mxu0 %v260
    %312 = vmatpush1.bf16.msra.mxu0 %v259
    %313 = vmatprep.subr.bf16.mxu0 %v264
    %314 = vmatpush1.bf16.msra.mxu0 %v263
    %315 = vmatprep.subr.bf16.mxu0 0
    %316 = vmatpush1.bf16.msra.mxu0 0
    %317 = vmatprep.subr.bf16.mxu0 0
    %318 = vmatpush1.bf16.msra.mxu0 0
    %319 = vmatprep.subr.bf16.mxu0 0
    %320 = vmatpush1.bf16.msra.mxu0 0
    %321 = vmatprep.subr.bf16.mxu0 0
    %322 = vmatpush1.bf16.msra.mxu0 0
    %323 = vmatprep.subr.bf16.mxu0 0
    %324 = vmatpush1.bf16.msra.mxu0 0
    %325 = vmatprep.subr.bf16.mxu0 0
    %326 = vmatpush1.bf16.msra.mxu0 0
    %327 = vmatprep.subr.bf16.mxu0 0
    %328 = vmatpush1.bf16.msra.mxu0 0
    %329 = vmatprep.subr.bf16.mxu0 0
    %330 = vmatpush1.bf16.msra.mxu0 0
    %331 = vmatprep.mubr.bf16.mxu0 0
    %332 = vmatmul.mubr.bf16.gmra.mrb[0].mxu0 %v73
    %v333 = vpop.f32.mrb[0].mxu0
    %v334 = vadd.f32 0.0, %v333
    %v335 = vpop.f32.mrb[0].mxu0
    %v336 = vadd.f32 0.0, %v335
    %v337 = vpop.f32.mrb[0].mxu0
    %v338 = vadd.f32 0.0, %v337
    %v339 = vpop.f32.mrb[0].mxu0
    %v340 = vadd.f32 0.0, %v339
    %341 = vdwg.mxu0
    %342 = vmatprep.subr.bf16.mxu0 %v238
    %343 = vmatpush1.bf16.msra.mxu0 %v237
    %344 = vmatprep.subr.bf16.mxu0 %v242
    %345 = vmatpush1.bf16.msra.mxu0 %v241
    %346 = vmatprep.subr.bf16.mxu0 %v246
    %347 = vmatpush1.bf16.msra.mxu0 %v245
    %348 = vmatprep.subr.bf16.mxu0 %v250
    %349 = vmatpush1.bf16.msra.mxu0 %v249
    %350 = vmatprep.subr.bf16.mxu0 %v254
    %351 = vmatpush1.bf16.msra.mxu0 %v253
    %352 = vmatprep.subr.bf16.mxu0 %v258
    %353 = vmatpush1.bf16.msra.mxu0 %v257
    %354 = vmatprep.subr.bf16.mxu0 %v262
    %355 = vmatpush1.bf16.msra.mxu0 %v261
    %356 = vmatprep.subr.bf16.mxu0 %v266
    %357 = vmatpush1.bf16.msra.mxu0 %v265
    %358 = vmatprep.subr.bf16.mxu0 0
    %359 = vmatpush1.bf16.msra.mxu0 0
    %360 = vmatprep.subr.bf16.mxu0 0
    %361 = vmatpush1.bf16.msra.mxu0 0
    %362 = vmatprep.subr.bf16.mxu0 0
    %363 = vmatpush1.bf16.msra.mxu0 0
    %364 = vmatprep.subr.bf16.mxu0 0
    %365 = vmatpush1.bf16.msra.mxu0 0
    %366 = vmatprep.subr.bf16.mxu0 0
    %367 = vmatpush1.bf16.msra.mxu0 0
    %368 = vmatprep.subr.bf16.mxu0 0
    %369 = vmatpush1.bf16.msra.mxu0 0
    %370 = vmatprep.subr.bf16.mxu0 0
    %371 = vmatpush1.bf16.msra.mxu0 0
    %372 = vmatprep.subr.bf16.mxu0 0
    %373 = vmatpush1.bf16.msra.mxu0 0
    %374 = vmatprep.mubr.bf16.mxu0 0
    %375 = vmatmul.mubr.bf16.gmra.mrb[0].mxu0 %v73
    %v376 = vpop.f32.mrb[0].mxu0
    %v377 = vadd.f32 0.0, %v376
    %v378 = vpop.f32.mrb[0].mxu0
    %v379 = vadd.f32 0.0, %v378
    %v380 = vpop.f32.mrb[0].mxu0
    %v381 = vadd.f32 0.0, %v380
    %v382 = vpop.f32.mrb[0].mxu0
    %v383 = vadd.f32 0.0, %v382
    %384 = vdwg.mxu0
    %v417 = vunpack.c.l.b16 %v75
    %v418 = vunpack.c.h.b16 %v75
    %v419 = vunpack.c.l.b16 %v76
    %v420 = vunpack.c.h.b16 %v76
    %v421 = vunpack.c.l.b16 %v77
    %v422 = vunpack.c.h.b16 %v77
    %v423 = vunpack.c.l.b16 %v78
    %v424 = vunpack.c.h.b16 %v78
    %v425 = vunpack.c.l.b16 %v79
    %v426 = vunpack.c.h.b16 %v79
    %v427 = vunpack.c.l.b16 %v80
    %v428 = vunpack.c.h.b16 %v80
    %v429 = vunpack.c.l.b16 %v81
    %v430 = vunpack.c.h.b16 %v81
    %v431 = vunpack.c.l.b16 %v82
    %v432 = vunpack.c.h.b16 %v82
    %v433 = vunpack.c.l.b16 %v83
    %v434 = vunpack.c.h.b16 %v83
    %v435 = vunpack.c.l.b16 %v84
    %v436 = vunpack.c.h.b16 %v84
    %v437 = vunpack.c.l.b16 %v85
    %v438 = vunpack.c.h.b16 %v85
    %v439 = vunpack.c.l.b16 %v86
    %v440 = vunpack.c.h.b16 %v86
    %v441 = vunpack.c.l.b16 %v87
    %v442 = vunpack.c.h.b16 %v87
    %v443 = vunpack.c.l.b16 %v88
    %v444 = vunpack.c.h.b16 %v88
    %v445 = vunpack.c.l.b16 %v89
    %v446 = vunpack.c.h.b16 %v89
    %v447 = vunpack.c.l.b16 %v90
    %v448 = vunpack.c.h.b16 %v90
    %v449 = vunpack.c.l.b16 %v91
    %v450 = vunpack.c.h.b16 %v91
    %v451 = vunpack.c.l.b16 %v92
    %v452 = vunpack.c.h.b16 %v92
    %v453 = vunpack.c.l.b16 %v93
    %v454 = vunpack.c.h.b16 %v93
    %v455 = vunpack.c.l.b16 %v94
    %v456 = vunpack.c.h.b16 %v94
    %v457 = vunpack.c.l.b16 %v95
    %v458 = vunpack.c.h.b16 %v95
    %v459 = vunpack.c.l.b16 %v96
    %v460 = vunpack.c.h.b16 %v96
    %v461 = vunpack.c.l.b16 %v97
    %v462 = vunpack.c.h.b16 %v97
    %v463 = vunpack.c.l.b16 %v98
    %v464 = vunpack.c.h.b16 %v98
    %v465 = vunpack.c.l.b16 %v99
    %v466 = vunpack.c.h.b16 %v99
    %v467 = vunpack.c.l.b16 %v100
    %v468 = vunpack.c.h.b16 %v100
    %v469 = vunpack.c.l.b16 %v101
    %v470 = vunpack.c.h.b16 %v101
    %v471 = vunpack.c.l.b16 %v102
    %v472 = vunpack.c.h.b16 %v102
    %v473 = vunpack.c.l.b16 %v103
    %v474 = vunpack.c.h.b16 %v103
    %v475 = vunpack.c.l.b16 %v104
    %v476 = vunpack.c.h.b16 %v104
    %v477 = vunpack.c.l.b16 %v105
    %v478 = vunpack.c.h.b16 %v105
    %v479 = vunpack.c.l.b16 %v106
    %v480 = vunpack.c.h.b16 %v106
    %v481 = vpack.c.b16 %v421, %v417
    %v482 = vpack.c.b16 %v422, %v418
    %v483 = vpack.c.b16 %v423, %v419
    %v484 = vpack.c.b16 %v424, %v420
    %v485 = vpack.c.b16 %v429, %v425
    %v486 = vpack.c.b16 %v430, %v426
    %v487 = vpack.c.b16 %v431, %v427
    %v488 = vpack.c.b16 %v432, %v428
    %v489 = vpack.c.b16 %v437, %v433
    %v490 = vpack.c.b16 %v438, %v434
    %v491 = vpack.c.b16 %v439, %v435
    %v492 = vpack.c.b16 %v440, %v436
    %v493 = vpack.c.b16 %v445, %v441
    %v494 = vpack.c.b16 %v446, %v442
    %v495 = vpack.c.b16 %v447, %v443
    %v496 = vpack.c.b16 %v448, %v444
    %v497 = vpack.c.b16 %v453, %v449
    %v498 = vpack.c.b16 %v454, %v450
    %v499 = vpack.c.b16 %v455, %v451
    %v500 = vpack.c.b16 %v456, %v452
    %v501 = vpack.c.b16 %v461, %v457
    %v502 = vpack.c.b16 %v462, %v458
    %v503 = vpack.c.b16 %v463, %v459
    %v504 = vpack.c.b16 %v464, %v460
    %v505 = vpack.c.b16 %v469, %v465
    %v506 = vpack.c.b16 %v470, %v466
    %v507 = vpack.c.b16 %v471, %v467
    %v508 = vpack.c.b16 %v472, %v468
    %v509 = vpack.c.b16 %v477, %v473
    %v510 = vpack.c.b16 %v478, %v474
    %v511 = vpack.c.b16 %v479, %v475
    %v512 = vpack.c.b16 %v480, %v476
    %545 = vmatprep.subr.bf16.mxu0 %v482
    %546 = vmatpush1.bf16.msra.mxu0 %v481
    %547 = vmatprep.subr.bf16.mxu0 %v486
    %548 = vmatpush1.bf16.msra.mxu0 %v485
    %549 = vmatprep.subr.bf16.mxu0 %v490
    %550 = vmatpush1.bf16.msra.mxu0 %v489
    %551 = vmatprep.subr.bf16.mxu0 %v494
    %552 = vmatpush1.bf16.msra.mxu0 %v493
    %553 = vmatprep.subr.bf16.mxu0 %v498
    %554 = vmatpush1.bf16.msra.mxu0 %v497
    %555 = vmatprep.subr.bf16.mxu0 %v502
    %556 = vmatpush1.bf16.msra.mxu0 %v501
    %557 = vmatprep.subr.bf16.mxu0 %v506
    %558 = vmatpush1.bf16.msra.mxu0 %v505
    %559 = vmatprep.subr.bf16.mxu0 %v510
    %560 = vmatpush1.bf16.msra.mxu0 %v509
    %561 = vmatprep.subr.bf16.mxu0 0
    %562 = vmatpush1.bf16.msra.mxu0 0
    %563 = vmatprep.subr.bf16.mxu0 0
    %564 = vmatpush1.bf16.msra.mxu0 0
    %565 = vmatprep.subr.bf16.mxu0 0
    %566 = vmatpush1.bf16.msra.mxu0 0
    %567 = vmatprep.subr.bf16.mxu0 0
    %568 = vmatpush1.bf16.msra.mxu0 0
    %569 = vmatprep.subr.bf16.mxu0 0
    %570 = vmatpush1.bf16.msra.mxu0 0
    %571 = vmatprep.subr.bf16.mxu0 0
    %572 = vmatpush1.bf16.msra.mxu0 0
    %573 = vmatprep.subr.bf16.mxu0 0
    %574 = vmatpush1.bf16.msra.mxu0 0
    %575 = vmatprep.subr.bf16.mxu0 0
    %576 = vmatpush1.bf16.msra.mxu0 0
    %577 = vmatprep.mubr.bf16.mxu0 0
    %578 = vmatmul.mubr.bf16.gmra.mrb[0].mxu0 %v70
    %v579 = vpop.f32.mrb[0].mxu0
    %v580 = vadd.f32 %v334, %v579
    %v581 = vpop.f32.mrb[0].mxu0
    %v582 = vadd.f32 %v336, %v581
    %v583 = vpop.f32.mrb[0].mxu0
    %v584 = vadd.f32 %v338, %v583
    %v585 = vpop.f32.mrb[0].mxu0
    %v586 = vadd.f32 %v340, %v585
    %587 = vdwg.mxu0
    %588 = vmatprep.subr.bf16.mxu0 %v484
    %589 = vmatpush1.bf16.msra.mxu0 %v483
    %590 = vmatprep.subr.bf16.mxu0 %v488
    %591 = vmatpush1.bf16.msra.mxu0 %v487
    %592 = vmatprep.subr.bf16.mxu0 %v492
    %593 = vmatpush1.bf16.msra.mxu0 %v491
    %594 = vmatprep.subr.bf16.mxu0 %v496
    %595 = vmatpush1.bf16.msra.mxu0 %v495
    %596 = vmatprep.subr.bf16.mxu0 %v500
    %597 = vmatpush1.bf16.msra.mxu0 %v499
    %598 = vmatprep.subr.bf16.mxu0 %v504
    %599 = vmatpush1.bf16.msra.mxu0 %v503
    %600 = vmatprep.subr.bf16.mxu0 %v508
    %601 = vmatpush1.bf16.msra.mxu0 %v507
    %602 = vmatprep.subr.bf16.mxu0 %v512
    %603 = vmatpush1.bf16.msra.mxu0 %v511
    %604 = vmatprep.subr.bf16.mxu0 0
    %605 = vmatpush1.bf16.msra.mxu0 0
    %606 = vmatprep.subr.bf16.mxu0 0
    %607 = vmatpush1.bf16.msra.mxu0 0
    %608 = vmatprep.subr.bf16.mxu0 0
    %609 = vmatpush1.bf16.msra.mxu0 0
    %610 = vmatprep.subr.bf16.mxu0 0
    %611 = vmatpush1.bf16.msra.mxu0 0
    %612 = vmatprep.subr.bf16.mxu0 0
    %613 = vmatpush1.bf16.msra.mxu0 0
    %614 = vmatprep.subr.bf16.mxu0 0
    %615 = vmatpush1.bf16.msra.mxu0 0
    %616 = vmatprep.subr.bf16.mxu0 0
    %617 = vmatpush1.bf16.msra.mxu0 0
    %618 = vmatprep.subr.bf16.mxu0 0
    %619 = vmatpush1.bf16.msra.mxu0 0
    %620 = vmatprep.mubr.bf16.mxu0 0
    %621 = vmatmul.mubr.bf16.gmra.mrb[0].mxu0 %v70
    %v622 = vpop.f32.mrb[0].mxu0
    %v623 = vadd.f32 %v377, %v622
    %v624 = vpop.f32.mrb[0].mxu0
    %v625 = vadd.f32 %v379, %v624
    %v626 = vpop.f32.mrb[0].mxu0
    %v627 = vadd.f32 %v381, %v626
    %v628 = vpop.f32.mrb[0].mxu0
    %v629 = vadd.f32 %v383, %v628
    %630 = vdwg.mxu0
    %v632 = vlaneseq
    %v633 = vshrl.u32 %v632, 7
    %v634 = vsub.s32 0, %v633
    %v635 = vrot.slane %v74, %v634
    %v636 = vlaneseq
    %v637 = vshrl.u32 %v636, 7
    %v638 = vsub.s32 2, %v637
    %v639 = vrot.slane %v74, %v638
    %v640 = vlaneseq
    %v641 = vshrl.u32 %v640, 7
    %v642 = vsub.s32 4, %v641
    %v643 = vrot.slane %v74, %v642
    %v644 = vlaneseq
    %v645 = vshrl.u32 %v644, 7
    %v646 = vsub.s32 6, %v645
    %v647 = vrot.slane %v74, %v646
    %v652 = vlaneseq
    %v653 = vshrl.u32 %v652, 7
    %v654 = vsub.s32 0, %v653
    %v655 = vrot.slane %v635, %v654
    %v656 = vlaneseq
    %v657 = vshrl.u32 %v656, 7
    %v658 = vsub.s32 0, %v657
    %v659 = vrot.slane %v639, %v658
    %v660 = vlaneseq
    %v661 = vshrl.u32 %v660, 7
    %v662 = vsub.s32 0, %v661
    %v663 = vrot.slane %v643, %v662
    %v664 = vlaneseq
    %v665 = vshrl.u32 %v664, 7
    %v666 = vsub.s32 0, %v665
    %v667 = vrot.slane %v647, %v666
    %v668 = vadd.f32 %v580, %v655
    %v669 = vadd.f32 %v582, %v659
    %v670 = vadd.f32 %v623, %v663
    %v671 = vadd.f32 %v625, %v667
    %v672 = vadd.f32 %v584, %v655
    %v673 = vadd.f32 %v586, %v659
    %v674 = vadd.f32 %v627, %v663
    %v675 = vadd.f32 %v629, %v667
    %v676 = vmul.f32 %v668, 0.5
    %v677 = vmul.f32 %v672, 0.5
    %v678 = vtanh.pop %v676
    %v679 = vtanh.pop %v677
    %v680 = vmul.f32 %v678, 0.5
    %v681 = vmul.f32 %v679, 0.5
    %v682 = vadd.f32 %v680, 0.5
    %v683 = vadd.f32 %v681, 0.5
    %v684 = vmul.f32 %v669, 0.5
    %v685 = vmul.f32 %v673, 0.5
    %v686 = vtanh.pop %v684
    %v687 = vtanh.pop %v685
    %v688 = vmul.f32 %v686, 0.5
    %v689 = vmul.f32 %v687, 0.5
    %v690 = vadd.f32 %v688, 0.5
    %v691 = vadd.f32 %v689, 0.5
    %v692 = vtanh.pop %v670
    %v693 = vtanh.pop %v674
    %v694 = vmul.f32 %v671, 0.5
    %v695 = vmul.f32 %v675, 0.5
    %v696 = vtanh.pop %v694
    %v697 = vtanh.pop %v695
    %v698 = vmul.f32 %v696, 0.5
    %v699 = vmul.f32 %v697, 0.5
    %v700 = vadd.f32 %v698, 0.5
    %v701 = vadd.f32 %v699, 0.5
    %v702 = vld [vmem:[%s2] sm:$0xff]
    %v703 = vld [vmem:[%s2 + $0x8] sm:$0xff]
    %v704 = vmul.f32 %v690, %v702
    %v705 = vmul.f32 %v691, %v703
    %v706 = vmul.f32 %v682, %v692
    %v707 = vmul.f32 %v683, %v693
    %v708 = vadd.f32 %v704, %v706
    %v709 = vadd.f32 %v705, %v707
    %v710 = vtanh.pop %v708
    %v711 = vtanh.pop %v709
    %v712 = vmul.f32 %v700, %v710
    %v713 = vmul.f32 %v701, %v711
    %v714 = vpack.c.bf16 %v713, %v712
    %v715 = vld [vmem:[#allocation6] sm:$0xf]
    %v716 = vld [vmem:[#allocation6 + $0x4] sm:$0xf]
    %v717 = vld [vmem:[#allocation6 + $0x8] sm:$0xf]
    %v718 = vld [vmem:[#allocation6 + $0xc] sm:$0xf]
    %v719 = vld [vmem:[#allocation6 + $0x10] sm:$0xf]
    %v720 = vld [vmem:[#allocation6 + $0x14] sm:$0xf]
    %v721 = vld [vmem:[#allocation6 + $0x18] sm:$0xf]
    %v722 = vld [vmem:[#allocation6 + $0x1c] sm:$0xf]
    %v723 = vld [vmem:[#allocation6 + $0x20] sm:$0xf]
    %v724 = vld [vmem:[#allocation6 + $0x24] sm:$0xf]
    %v725 = vld [vmem:[#allocation6 + $0x28] sm:$0xf]
    %v726 = vld [vmem:[#allocation6 + $0x2c] sm:$0xf]
    %v727 = vld [vmem:[#allocation6 + $0x30] sm:$0xf]
    %v728 = vld [vmem:[#allocation6 + $0x34] sm:$0xf]
    %v729 = vld [vmem:[#allocation6 + $0x38] sm:$0xf]
    %v730 = vld [vmem:[#allocation6 + $0x3c] sm:$0xf]
    %v731 = vlaneseq
    %v732 = vshrl.u32 %v731, 7
    %v733 = vsub.s32 1, %v732
    %v734 = vrot.slane %v74, %v733
    %v751 = vunpack.c.l.b16 %v715
    %v752 = vunpack.c.l.b16 %v716
    %v753 = vunpack.c.l.b16 %v717
    %v754 = vunpack.c.l.b16 %v718
    %v755 = vunpack.c.l.b16 %v719
    %v756 = vunpack.c.l.b16 %v720
    %v757 = vunpack.c.l.b16 %v721
    %v758 = vunpack.c.l.b16 %v722
    %v759 = vunpack.c.l.b16 %v723
    %v760 = vunpack.c.l.b16 %v724
    %v761 = vunpack.c.l.b16 %v725
    %v762 = vunpack.c.l.b16 %v726
    %v763 = vunpack.c.l.b16 %v727
    %v764 = vunpack.c.l.b16 %v728
    %v765 = vunpack.c.l.b16 %v729
    %v766 = vunpack.c.l.b16 %v730
    %v767 = vpack.c.b16 %v752, %v751
    %v768 = vpack.c.b16 %v754, %v753
    %v769 = vpack.c.b16 %v756, %v755
    %v770 = vpack.c.b16 %v758, %v757
    %v771 = vpack.c.b16 %v760, %v759
    %v772 = vpack.c.b16 %v762, %v761
    %v773 = vpack.c.b16 %v764, %v763
    %v774 = vpack.c.b16 %v766, %v765
    %783 = vmatprep.subr.bf16.mxu0 0
    %784 = vmatpush1.bf16.msra.mxu0 %v767
    %785 = vmatprep.subr.bf16.mxu0 0
    %786 = vmatpush1.bf16.msra.mxu0 %v768
    %787 = vmatprep.subr.bf16.mxu0 0
    %788 = vmatpush1.bf16.msra.mxu0 %v769
    %789 = vmatprep.subr.bf16.mxu0 0
    %790 = vmatpush1.bf16.msra.mxu0 %v770
    %791 = vmatprep.subr.bf16.mxu0 0
    %792 = vmatpush1.bf16.msra.mxu0 %v771
    %793 = vmatprep.subr.bf16.mxu0 0
    %794 = vmatpush1.bf16.msra.mxu0 %v772
    %795 = vmatprep.subr.bf16.mxu0 0
    %796 = vmatpush1.bf16.msra.mxu0 %v773
    %797 = vmatprep.subr.bf16.mxu0 0
    %798 = vmatpush1.bf16.msra.mxu0 %v774
    %799 = vmatprep.subr.bf16.mxu0 0
    %800 = vmatpush1.bf16.msra.mxu0 0
    %801 = vmatprep.subr.bf16.mxu0 0
    %802 = vmatpush1.bf16.msra.mxu0 0
    %803 = vmatprep.subr.bf16.mxu0 0
    %804 = vmatpush1.bf16.msra.mxu0 0
    %805 = vmatprep.subr.bf16.mxu0 0
    %806 = vmatpush1.bf16.msra.mxu0 0
    %807 = vmatprep.subr.bf16.mxu0 0
    %808 = vmatpush1.bf16.msra.mxu0 0
    %809 = vmatprep.subr.bf16.mxu0 0
    %810 = vmatpush1.bf16.msra.mxu0 0
    %811 = vmatprep.subr.bf16.mxu0 0
    %812 = vmatpush1.bf16.msra.mxu0 0
    %813 = vmatprep.subr.bf16.mxu0 0
    %814 = vmatpush1.bf16.msra.mxu0 0
    %815 = vmatprep.mubr.bf16.mxu0 0
    %816 = vmatmul.mubr.bf16.gmra.mrb[0].mxu0 %v714
    %v817 = vpop.f32.mrb[0].mxu0
    %v818 = vadd.f32 %v734, %v817
    %v819 = vpop.f32.mrb[0].mxu0
    %v820 = vpop.f32.mrb[0].mxu0
    %v821 = vadd.f32 %v734, %v820
    %v822 = vpop.f32.mrb[0].mxu0
    %823 = vdwg.mxu0
    %824 = vst [vmem:[%s7] sm:$0xff] %v818
    %825 = vst [vmem:[%s7 + $0x18] sm:$0xff] %v821
    %826 = vst [vmem:[%s7 + $0x8] sm:$0xff] %v712
    %827 = vst [vmem:[%s7 + $0x20] sm:$0xff] %v713
    %828 = vst [vmem:[%s7 + $0x10] sm:$0xff] %v708
    %829 = vst [vmem:[%s7 + $0x28] sm:$0xff] %v709
    // Predicated region
    $region42: #{_lstm_layer_forward.1} parent=1 // pred_check
      _
    $region43: #{_lstm_layer_forward.1} parent=1 // pred_check_branch
      %831 = sbr.rel (0) target = $region45
    $region44: #{_lstm_layer_forward.1} parent=1 // pred_region
      _
    $region45: #{_lstm_layer_forward.1} parent=1 // pred_fallthru
      _
    // Predicated region
    $region46: #{_lstm_layer_forward.1} parent=1 // pred_check
      _
    $region47: #{_lstm_layer_forward.1} parent=1 // pred_check_branch
      %833 = sbr.rel (0) target = $region49
    $region48: #{_lstm_layer_forward.1} parent=1 // pred_region
      _
    $region49: #{_lstm_layer_forward.1} parent=1 // pred_fallthru
      _
    %834 = vsyncpa [#allocation3], 1
    %835 = vsyncpa [#allocation5], 1

</llo_original>
